<compile_context>
chip_gen: v5e
topology: v5e:2x2
jax: 0.10.0
libtpu: 0.0.40
codegen_flags: <defaults>
</compile_context>

<pallas_src>
import functools
import math

import jax
import jax.numpy as jnp
from jax import lax
from jax.experimental import pallas as pl
from jax.experimental.pallas import tpu as pltpu


def _pad2(x, rows, cols):
    return jnp.pad(x, ((0, rows - x.shape[0]), (0, cols - x.shape[1])))


# ---------------------------------------------------------------------------
# Fused kernel: full n_iter loop, everything VMEM-resident.
# ---------------------------------------------------------------------------
def _fused_interaction_kernel(sents_ref, func_ref,
                              f2s_wq_ref, f2s_bq_ref, f2s_wkv_ref, f2s_bkv_ref,
                              s2f_wq_ref, s2f_bq_ref, s2f_wkv_ref, s2f_bkv_ref,
                              sents_out_ref, func_out_ref,
                              *, n_iter, dp):
    # Hidden states live in f32 for all elementwise math (v5e has no bf16 VPU).
    sents = sents_ref[...].astype(jnp.float32)      # [Ns, Dp]
    func = func_ref[...].astype(jnp.float32)        # [Nf, Dp]
    ns, nf = sents.shape[0], func.shape[0]

    # Pre-broadcast the (tiny) biases ONCE: JAX does not CSE broadcast_in_dim, so
    # broadcasting inside the statically unrolled loop would re-emit it per iteration.
    f2s_bq = jnp.broadcast_to(f2s_bq_ref[...], (ns, dp))
    f2s_bkv = jnp.broadcast_to(f2s_bkv_ref[...], (nf, 2 * dp))
    s2f_bq = jnp.broadcast_to(s2f_bq_ref[...], (nf, dp))
    s2f_bkv = jnp.broadcast_to(s2f_bkv_ref[...], (ns, 2 * dp))

    def block(q_in, kv_in, wq_ref, bq, wkv_ref, bkv):
        # relu(q_in + relu(softmax((q_in Wq' + bq')(kv_in Wk + bk)^T) (kv_in Wv + bv)))
        # Wq'/bq' already carry the 1/sqrt(d) scale (folded at pack time).
        # Weight refs are read at the point of use so Mosaic can fold the VMEM loads
        # into the MXU operand feed instead of keeping the weights live in vregs
        # across the unrolled loop.
        q = jnp.dot(q_in.astype(jnp.bfloat16), wq_ref[...],
                    preferred_element_type=jnp.float32) + bq           # [Nq, Dp]  f32
        kv = jnp.dot(kv_in.astype(jnp.bfloat16), wkv_ref[...],
                     preferred_element_type=jnp.float32) + bkv         # [Nk, 2Dp] f32
        k = kv[:, :dp]                                                  # 128-aligned split
        v = kv[:, dp:]
        # Contract last dim of both operands (no explicit k.T in the trace). If Mosaic
        # lowers this via an XLU transpose of k, that cost is accepted knowingly: it is
        # off the VALU/MXU critical slots and the tile is tiny.
        z = lax.dot_general(q, k, (((1,), (1,)), ((), ())),
                            preferred_element_type=jnp.float32)         # [Nq, Nk]
        z_max = jnp.max(z, axis=1, keepdims=True)
        e = jnp.exp(z - z_max)
        denom = jnp.sum(e, axis=1, keepdims=True)
        attn = e * pl.reciprocal(denom, approx=True)                    # EUP slot
        blk = jnp.maximum(
            jnp.dot(attn.astype(jnp.bfloat16), v.astype(jnp.bfloat16),
                    preferred_element_type=jnp.float32), 0.0)
        return jnp.maximum(q_in + blk, 0.0)

    # n_iter is a compile-time constant; statically unroll (short trip count).
    # TODO(synk): optionally merge the Q and KV projections into one stacked
    # [Nq+Nk, Dp] x [Dp, 3Dp] matmul; requires a bundle-count measurement first.
    for _ in range(n_iter):
        sents = block(sents, func, f2s_wq_ref, f2s_bq, f2s_wkv_ref, f2s_bkv)
        func = block(func, sents, s2f_wq_ref, s2f_bq, s2f_wkv_ref, s2f_bkv)

    sents_out_ref[...] = sents.astype(sents_out_ref.dtype)
    func_out_ref[...] = func.astype(func_out_ref.dtype)


# ---------------------------------------------------------------------------
# One-time weight packing (call at init, NOT per forward step).
# ---------------------------------------------------------------------------
def pack_interaction_params(params, d):
    """Pad the feature dim to lane-dense Dp, merge K/V into one [Dp, 2Dp] matmul,
    fold the 1/sqrt(d) softmax scale into Wq/bq, and cast matmul weights to bf16.
    Biases stay f32 (added to the f32 accumulator). Zero pad columns keep padded
    lanes of Q/K/V exactly zero, so the math matches the original d-dim module."""
    dp = max(128, ((d + 127) // 128) * 128)
    scale = 1.0 / math.sqrt(d)

    def pack_block(p):
        wq = (_pad2(p["wq"], dp, dp) * scale).astype(jnp.bfloat16)
        bq = (_pad2(p["bq"], 1, dp) * scale).astype(jnp.float32)
        wkv = jnp.concatenate([_pad2(p["wk"], dp, dp), _pad2(p["wv"], dp, dp)],
                              axis=1).astype(jnp.bfloat16)              # [Dp, 2Dp]
        bkv = jnp.concatenate([_pad2(p["bk"], 1, dp), _pad2(p["bv"], 1, dp)],
                              axis=1).astype(jnp.float32)               # [1, 2Dp]
        return wq, bq, wkv, bkv

    f2s_wq, f2s_bq, f2s_wkv, f2s_bkv = pack_block(params["func2sent"])
    s2f_wq, s2f_bq, s2f_wkv, s2f_bkv = pack_block(params["sent2func"])
    return {
        "f2s_wq": f2s_wq, "f2s_bq": f2s_bq, "f2s_wkv": f2s_wkv, "f2s_bkv": f2s_bkv,
        "s2f_wq": s2f_wq, "s2f_bq": s2f_bq, "s2f_wkv": s2f_wkv, "s2f_bkv": s2f_bkv,
    }


# ---------------------------------------------------------------------------
# Forward wrapper (per-call hot path: only activation padding + one pallas_call).
# ---------------------------------------------------------------------------
def sentence_function_interaction(sents_emb, func_emb, packed, n_iter):
    """Mirrors Sentence_Function_Interaction.forward. `packed` comes from
    pack_interaction_params (weights already padded / merged / scaled / bf16)."""
    ns, d = sents_emb.shape
    nf, _ = func_emb.shape
    dp = packed["f2s_wq"].shape[0]

    sents_p = _pad2(sents_emb, ns, dp)
    func_p = _pad2(func_emb, nf, dp)

    flops_per_iter = (2 * dp * dp * (ns + 2 * nf) + 4 * ns * nf * dp      # func2sent
                      + 2 * dp * dp * (nf + 2 * ns) + 4 * ns * nf * dp)   # sent2func
    bytes_accessed = (4 * 2 * (ns + nf) * dp           # f32 activations in + out
                      + 2 * 2 * 3 * dp * dp            # bf16 weights (2 blocks x [Dp,3Dp])
                      + 4 * 2 * 3 * dp)                # f32 biases
    cost = pl.CostEstimate(flops=n_iter * flops_per_iter,
                           transcendentals=n_iter * 2 * ns * nf,
                           bytes_accessed=bytes_accessed)

    kernel = functools.partial(_fused_interaction_kernel, n_iter=n_iter, dp=dp)
    vmem = pl.BlockSpec(memory_space=pltpu.MemorySpace.VMEM)

    sents_out_p, func_out_p = pl.pallas_call(
        kernel,
        out_shape=(jax.ShapeDtypeStruct((ns, dp), sents_emb.dtype),
                   jax.ShapeDtypeStruct((nf, dp), func_emb.dtype)),
        in_specs=[vmem] * 10,
        out_specs=(vmem, vmem),
        # Donate the padded activation buffers (same shapes/dtypes as the outputs).
        input_output_aliases={0: 0, 1: 1},
        cost_estimate=cost,
    )(sents_p, func_p,
      packed["f2s_wq"], packed["f2s_bq"], packed["f2s_wkv"], packed["f2s_bkv"],
      packed["s2f_wq"], packed["s2f_bq"], packed["s2f_wkv"], packed["s2f_bkv"])

    # Single TensorCore, no grid: total footprint (<0.5 MiB) is VMEM-resident on
    # v5e/v6e/v7x, so a megacore split would be pure overhead at these sizes.
    # TODO(synk): for much larger Ns/Nf add a "parallel" query-tile grid axis and
    # flash-style key tiling; re-derive tile sizes for v7x's 64 MiB VMEM and set
    # pltpu.CompilerParams(vmem_limit_bytes=...) explicitly.
    return sents_out_p[:, :d], func_out_p[:, :d]


# ---------------------------------------------------------------------------
# Pure-JAX reference (exact f32 math, for correctness sanity check).
# ---------------------------------------------------------------------------
def _ref_block(q_in, kv_in, wq, bq, wk, bk, wv, bv):
    d = q_in.shape[-1]
    q = q_in @ wq + bq
    k = kv_in @ wk + bk
    v = kv_in @ wv + bv
    z = (1.0 / math.sqrt(d)) * (q @ k.T)
    attn = jax.nn.softmax(z, axis=1)
    return jnp.maximum(q_in + jnp.maximum(attn @ v, 0.0), 0.0)


def _ref_forward(sents_emb, func_emb, params, n_iter):
    sents_hid, func_hid = sents_emb, func_emb
    f2s, s2f = params["func2sent"], params["sent2func"]
    for _ in range(n_iter):
        sents_hid = _ref_block(sents_hid, func_hid,
                               f2s["wq"], f2s["bq"], f2s["wk"], f2s["bk"], f2s["wv"], f2s["bv"])
        func_hid = _ref_block(func_hid, sents_hid,
                              s2f["wq"], s2f["bq"], s2f["wk"], s2f["bk"], s2f["wv"], s2f["bv"])
    return sents_hid, func_hid


def _init_cross_attn_params(key, d):
    ks = jax.random.split(key, 6)
    scale = 1.0 / math.sqrt(d)
    return {
        "wq": jax.random.normal(ks[0], (d, d), jnp.float32) * scale,
        "bq": jax.random.normal(ks[1], (1, d), jnp.float32) * 0.01,
        "wk": jax.random.normal(ks[2], (d, d), jnp.float32) * scale,
        "bk": jax.random.normal(ks[3], (1, d), jnp.float32) * 0.01,
        "wv": jax.random.normal(ks[4], (d, d), jnp.float32) * scale,
        "bv": jax.random.normal(ks[5], (1, d), jnp.float32) * 0.01,
    }


if __name__ == "__main__":
    # Small shapes: Ns sentences, Nf functions, word_emb_dim=D.
    Ns, Nf, D = 8, 16, 32
    SENT_EMB_DIM = 48   # only used by the (unused) linear_pool
    N_ITER = 2

    key = jax.random.PRNGKey(0)
    k_sent, k_func, k_f2s, k_s2f, k_pool = jax.random.split(key, 5)

    sents_emb = jax.random.normal(k_sent, (Ns, D), jnp.float32)
    func_emb = jax.random.normal(k_func, (Nf, D), jnp.float32)

    params = {
        "func2sent": _init_cross_attn_params(k_f2s, D),
        "sent2func": _init_cross_attn_params(k_s2f, D),
        # linear_pool exists in the PyTorch __init__ but is never used in forward():
        "linear_pool_w": jax.random.normal(k_pool, (D, SENT_EMB_DIM), jnp.float32) / math.sqrt(D),
        "linear_pool_b": jnp.zeros((SENT_EMB_DIM,), jnp.float32),
    }

    # One-time weight packing, hoisted out of the per-call hot path.
    packed = pack_interaction_params(params, D)

    fwd = jax.jit(functools.partial(sentence_function_interaction, n_iter=N_ITER))
    sents_out, func_out = fwd(sents_emb, func_emb, packed)
    sents_out = jax.block_until_ready(sents_out)
    func_out = jax.block_until_ready(func_out)

    # Sanity check vs. the exact f32 reference. Tolerance is sized for bf16 MXU
    # operands (~0.4% relative per matmul, compounded over 2*n_iter blocks) plus the
    # approximate softmax reciprocal — this is intentional reduced-precision behavior.
    ref_s, ref_f = _ref_forward(sents_emb, func_emb, params, N_ITER)
    assert sents_out.shape == (Ns, D) and func_out.shape == (Nf, D)
    assert jnp.allclose(sents_out, ref_s, atol=5e-2, rtol=5e-2), "sents mismatch"
    assert jnp.allclose(func_out, ref_f, atol=5e-2, rtol=5e-2), "func mismatch"

    print("KERNEL_OK")
</pallas_src>

<mosaic_0001>
module attributes {stable_mosaic.version = 11 : i64} {
  func.func @_fused_interaction_kernel(%arg0: memref<8x128xf32, #tpu.memory_space<vmem>>, %arg1: memref<16x128xf32, #tpu.memory_space<vmem>>, %arg2: memref<128x128xbf16, #tpu.memory_space<vmem>>, %arg3: memref<1x128xf32, #tpu.memory_space<vmem>>, %arg4: memref<128x256xbf16, #tpu.memory_space<vmem>>, %arg5: memref<1x256xf32, #tpu.memory_space<vmem>>, %arg6: memref<128x128xbf16, #tpu.memory_space<vmem>>, %arg7: memref<1x128xf32, #tpu.memory_space<vmem>>, %arg8: memref<128x256xbf16, #tpu.memory_space<vmem>>, %arg9: memref<1x256xf32, #tpu.memory_space<vmem>>, %arg10: memref<8x128xf32, #tpu.memory_space<vmem>>, %arg11: memref<16x128xf32, #tpu.memory_space<vmem>>) attributes {dimension_semantics = [], scalar_prefetch = 0 : i64, scratch_operands = 0 : i64, tpu.core_type = #tpu.core_type<tc>} {
    %c0 = arith.constant 0 : index
    %c0_0 = arith.constant 0 : index
    %0 = vector.load %arg0[%c0, %c0_0] : memref<8x128xf32, #tpu.memory_space<vmem>>, vector<8x128xf32>
    %c0_1 = arith.constant 0 : index
    %c0_2 = arith.constant 0 : index
    %1 = vector.load %arg1[%c0_1, %c0_2] : memref<16x128xf32, #tpu.memory_space<vmem>>, vector<16x128xf32>
    %c0_3 = arith.constant 0 : index
    %c0_4 = arith.constant 0 : index
    %2 = vector.load %arg3[%c0_3, %c0_4] : memref<1x128xf32, #tpu.memory_space<vmem>>, vector<1x128xf32>
    %3 = vector.shape_cast %2 : vector<1x128xf32> to vector<1x128xf32>
    %4 = vector.broadcast %3 : vector<1x128xf32> to vector<8x128xf32>
    %c0_5 = arith.constant 0 : index
    %c0_6 = arith.constant 0 : index
    %5 = vector.load %arg5[%c0_5, %c0_6] : memref<1x256xf32, #tpu.memory_space<vmem>>, vector<1x256xf32>
    %6 = vector.shape_cast %5 : vector<1x256xf32> to vector<1x256xf32>
    %7 = vector.broadcast %6 : vector<1x256xf32> to vector<16x256xf32>
    %c0_7 = arith.constant 0 : index
    %c0_8 = arith.constant 0 : index
    %8 = vector.load %arg7[%c0_7, %c0_8] : memref<1x128xf32, #tpu.memory_space<vmem>>, vector<1x128xf32>
    %9 = vector.shape_cast %8 : vector<1x128xf32> to vector<1x128xf32>
    %10 = vector.broadcast %9 : vector<1x128xf32> to vector<16x128xf32>
    %c0_9 = arith.constant 0 : index
    %c0_10 = arith.constant 0 : index
    %11 = vector.load %arg9[%c0_9, %c0_10] : memref<1x256xf32, #tpu.memory_space<vmem>>, vector<1x256xf32>
    %12 = vector.shape_cast %11 : vector<1x256xf32> to vector<1x256xf32>
    %13 = vector.broadcast %12 : vector<1x256xf32> to vector<8x256xf32>
    %14 = arith.truncf %0 : vector<8x128xf32> to vector<8x128xbf16>
    %c0_11 = arith.constant 0 : index
    %c0_12 = arith.constant 0 : index
    %15 = vector.load %arg2[%c0_11, %c0_12] : memref<128x128xbf16, #tpu.memory_space<vmem>>, vector<128x128xbf16>
    %cst = arith.constant dense<0.000000e+00> : vector<8x128xf32>
    %16 = tpu.matmul %14, %15, %cst {dimension_numbers = #tpu.dot_dimension_numbers<[1], [0], [0], [1], [0, 0, 1, 1], [], []>} : vector<8x128xbf16>, vector<128x128xbf16>, vector<8x128xf32> -> vector<8x128xf32>
    %17 = arith.addf %16, %4 : vector<8x128xf32>
    %18 = arith.truncf %1 : vector<16x128xf32> to vector<16x128xbf16>
    %c0_13 = arith.constant 0 : index
    %c0_14 = arith.constant 0 : index
    %19 = vector.load %arg4[%c0_13, %c0_14] : memref<128x256xbf16, #tpu.memory_space<vmem>>, vector<128x256xbf16>
    %cst_15 = arith.constant dense<0.000000e+00> : vector<16x256xf32>
    %20 = tpu.matmul %18, %19, %cst_15 {dimension_numbers = #tpu.dot_dimension_numbers<[1], [0], [0], [1], [0, 0, 1, 1], [], []>} : vector<16x128xbf16>, vector<128x256xbf16>, vector<16x256xf32> -> vector<16x256xf32>
    %21 = arith.addf %20, %7 : vector<16x256xf32>
    %22 = vector.extract_strided_slice %21 {offsets = [0, 0], sizes = [16, 128], strides = [1, 1]} : vector<16x256xf32> to vector<16x128xf32>
    %23 = vector.extract_strided_slice %21 {offsets = [0, 128], sizes = [16, 128], strides = [1, 1]} : vector<16x256xf32> to vector<16x128xf32>
    %cst_16 = arith.constant dense<0.000000e+00> : vector<8x16xf32>
    %24 = tpu.matmul %17, %22, %cst_16 {dimension_numbers = #tpu.dot_dimension_numbers<[1], [1], [0], [0], [0, 0, 1, 0], [], []>} : vector<8x128xf32>, vector<16x128xf32>, vector<8x16xf32> -> vector<8x16xf32>
    %cst_17 = arith.constant dense<0xFF800000> : vector<8xf32>
    %25 = vector.multi_reduction <maximumf>, %24, %cst_17 [1] : vector<8x16xf32> to vector<8xf32>
    %26 = vector.shape_cast %25 : vector<8xf32> to vector<8x1xf32>
    %27 = vector.broadcast %26 : vector<8x1xf32> to vector<8x16xf32>
    %28 = arith.subf %24, %27 : vector<8x16xf32>
    %29 = math.exp %28 : vector<8x16xf32>
    %cst_18 = arith.constant dense<0.000000e+00> : vector<8xf32>
    %30 = vector.multi_reduction <add>, %29, %cst_18 [1] : vector<8x16xf32> to vector<8xf32>
    %31 = vector.shape_cast %30 : vector<8xf32> to vector<8x1xf32>
    %32 = tpu.reciprocal %31 {approx = true} : vector<8x1xf32> -> vector<8x1xf32>
    %33 = vector.broadcast %32 : vector<8x1xf32> to vector<8x16xf32>
    %34 = arith.mulf %29, %33 : vector<8x16xf32>
    %35 = arith.truncf %34 : vector<8x16xf32> to vector<8x16xbf16>
    %36 = arith.truncf %23 : vector<16x128xf32> to vector<16x128xbf16>
    %cst_19 = arith.constant dense<0.000000e+00> : vector<8x128xf32>
    %37 = tpu.matmul %35, %36, %cst_19 {dimension_numbers = #tpu.dot_dimension_numbers<[1], [0], [0], [1], [0, 0, 1, 1], [], []>} : vector<8x16xbf16>, vector<16x128xbf16>, vector<8x128xf32> -> vector<8x128xf32>
    %cst_20 = arith.constant 0.000000e+00 : f32
    %38 = vector.broadcast %cst_20 : f32 to vector<8x128xf32>
    %39 = arith.maximumf %37, %38 : vector<8x128xf32>
    %40 = arith.addf %0, %39 : vector<8x128xf32>
    %cst_21 = arith.constant 0.000000e+00 : f32
    %41 = vector.broadcast %cst_21 : f32 to vector<8x128xf32>
    %42 = arith.maximumf %40, %41 : vector<8x128xf32>
    %43 = arith.truncf %1 : vector<16x128xf32> to vector<16x128xbf16>
    %c0_22 = arith.constant 0 : index
    %c0_23 = arith.constant 0 : index
    %44 = vector.load %arg6[%c0_22, %c0_23] : memref<128x128xbf16, #tpu.memory_space<vmem>>, vector<128x128xbf16>
    %cst_24 = arith.constant dense<0.000000e+00> : vector<16x128xf32>
    %45 = tpu.matmul %43, %44, %cst_24 {dimension_numbers = #tpu.dot_dimension_numbers<[1], [0], [0], [1], [0, 0, 1, 1], [], []>} : vector<16x128xbf16>, vector<128x128xbf16>, vector<16x128xf32> -> vector<16x128xf32>
    %46 = arith.addf %45, %10 : vector<16x128xf32>
    %47 = arith.truncf %42 : vector<8x128xf32> to vector<8x128xbf16>
    %c0_25 = arith.constant 0 : index
    %c0_26 = arith.constant 0 : index
    %48 = vector.load %arg8[%c0_25, %c0_26] : memref<128x256xbf16, #tpu.memory_space<vmem>>, vector<128x256xbf16>
    %cst_27 = arith.constant dense<0.000000e+00> : vector<8x256xf32>
    %49 = tpu.matmul %47, %48, %cst_27 {dimension_numbers = #tpu.dot_dimension_numbers<[1], [0], [0], [1], [0, 0, 1, 1], [], []>} : vector<8x128xbf16>, vector<128x256xbf16>, vector<8x256xf32> -> vector<8x256xf32>
    %50 = arith.addf %49, %13 : vector<8x256xf32>
    %51 = vector.extract_strided_slice %50 {offsets = [0, 0], sizes = [8, 128], strides = [1, 1]} : vector<8x256xf32> to vector<8x128xf32>
    %52 = vector.extract_strided_slice %50 {offsets = [0, 128], sizes = [8, 128], strides = [1, 1]} : vector<8x256xf32> to vector<8x128xf32>
    %cst_28 = arith.constant dense<0.000000e+00> : vector<16x8xf32>
    %53 = tpu.matmul %46, %51, %cst_28 {dimension_numbers = #tpu.dot_dimension_numbers<[1], [1], [0], [0], [0, 0, 1, 0], [], []>} : vector<16x128xf32>, vector<8x128xf32>, vector<16x8xf32> -> vector<16x8xf32>
    %cst_29 = arith.constant dense<0xFF800000> : vector<16xf32>
    %54 = vector.multi_reduction <maximumf>, %53, %cst_29 [1] : vector<16x8xf32> to vector<16xf32>
    %55 = vector.shape_cast %54 : vector<16xf32> to vector<16x1xf32>
    %56 = vector.broadcast %55 : vector<16x1xf32> to vector<16x8xf32>
    %57 = arith.subf %53, %56 : vector<16x8xf32>
    %58 = math.exp %57 : vector<16x8xf32>
    %cst_30 = arith.constant dense<0.000000e+00> : vector<16xf32>
    %59 = vector.multi_reduction <add>, %58, %cst_30 [1] : vector<16x8xf32> to vector<16xf32>
    %60 = vector.shape_cast %59 : vector<16xf32> to vector<16x1xf32>
    %61 = tpu.reciprocal %60 {approx = true} : vector<16x1xf32> -> vector<16x1xf32>
    %62 = vector.broadcast %61 : vector<16x1xf32> to vector<16x8xf32>
    %63 = arith.mulf %58, %62 : vector<16x8xf32>
    %64 = arith.truncf %63 : vector<16x8xf32> to vector<16x8xbf16>
    %65 = arith.truncf %52 : vector<8x128xf32> to vector<8x128xbf16>
    %cst_31 = arith.constant dense<0.000000e+00> : vector<16x128xf32>
    %66 = tpu.matmul %64, %65, %cst_31 {dimension_numbers = #tpu.dot_dimension_numbers<[1], [0], [0], [1], [0, 0, 1, 1], [], []>} : vector<16x8xbf16>, vector<8x128xbf16>, vector<16x128xf32> -> vector<16x128xf32>
    %cst_32 = arith.constant 0.000000e+00 : f32
    %67 = vector.broadcast %cst_32 : f32 to vector<16x128xf32>
    %68 = arith.maximumf %66, %67 : vector<16x128xf32>
    %69 = arith.addf %1, %68 : vector<16x128xf32>
    %cst_33 = arith.constant 0.000000e+00 : f32
    %70 = vector.broadcast %cst_33 : f32 to vector<16x128xf32>
    %71 = arith.maximumf %69, %70 : vector<16x128xf32>
    %72 = arith.truncf %42 : vector<8x128xf32> to vector<8x128xbf16>
    %c0_34 = arith.constant 0 : index
    %c0_35 = arith.constant 0 : index
    %73 = vector.load %arg2[%c0_34, %c0_35] : memref<128x128xbf16, #tpu.memory_space<vmem>>, vector<128x128xbf16>
    %cst_36 = arith.constant dense<0.000000e+00> : vector<8x128xf32>
    %74 = tpu.matmul %72, %73, %cst_36 {dimension_numbers = #tpu.dot_dimension_numbers<[1], [0], [0], [1], [0, 0, 1, 1], [], []>} : vector<8x128xbf16>, vector<128x128xbf16>, vector<8x128xf32> -> vector<8x128xf32>
    %75 = arith.addf %74, %4 : vector<8x128xf32>
    %76 = arith.truncf %71 : vector<16x128xf32> to vector<16x128xbf16>
    %c0_37 = arith.constant 0 : index
    %c0_38 = arith.constant 0 : index
    %77 = vector.load %arg4[%c0_37, %c0_38] : memref<128x256xbf16, #tpu.memory_space<vmem>>, vector<128x256xbf16>
    %cst_39 = arith.constant dense<0.000000e+00> : vector<16x256xf32>
    %78 = tpu.matmul %76, %77, %cst_39 {dimension_numbers = #tpu.dot_dimension_numbers<[1], [0], [0], [1], [0, 0, 1, 1], [], []>} : vector<16x128xbf16>, vector<128x256xbf16>, vector<16x256xf32> -> vector<16x256xf32>
    %79 = arith.addf %78, %7 : vector<16x256xf32>
    %80 = vector.extract_strided_slice %79 {offsets = [0, 0], sizes = [16, 128], strides = [1, 1]} : vector<16x256xf32> to vector<16x128xf32>
    %81 = vector.extract_strided_slice %79 {offsets = [0, 128], sizes = [16, 128], strides = [1, 1]} : vector<16x256xf32> to vector<16x128xf32>
    %cst_40 = arith.constant dense<0.000000e+00> : vector<8x16xf32>
    %82 = tpu.matmul %75, %80, %cst_40 {dimension_numbers = #tpu.dot_dimension_numbers<[1], [1], [0], [0], [0, 0, 1, 0], [], []>} : vector<8x128xf32>, vector<16x128xf32>, vector<8x16xf32> -> vector<8x16xf32>
    %cst_41 = arith.constant dense<0xFF800000> : vector<8xf32>
    %83 = vector.multi_reduction <maximumf>, %82, %cst_41 [1] : vector<8x16xf32> to vector<8xf32>
    %84 = vector.shape_cast %83 : vector<8xf32> to vector<8x1xf32>
    %85 = vector.broadcast %84 : vector<8x1xf32> to vector<8x16xf32>
    %86 = arith.subf %82, %85 : vector<8x16xf32>
    %87 = math.exp %86 : vector<8x16xf32>
    %cst_42 = arith.constant dense<0.000000e+00> : vector<8xf32>
    %88 = vector.multi_reduction <add>, %87, %cst_42 [1] : vector<8x16xf32> to vector<8xf32>
    %89 = vector.shape_cast %88 : vector<8xf32> to vector<8x1xf32>
    %90 = tpu.reciprocal %89 {approx = true} : vector<8x1xf32> -> vector<8x1xf32>
    %91 = vector.broadcast %90 : vector<8x1xf32> to vector<8x16xf32>
    %92 = arith.mulf %87, %91 : vector<8x16xf32>
    %93 = arith.truncf %92 : vector<8x16xf32> to vector<8x16xbf16>
    %94 = arith.truncf %81 : vector<16x128xf32> to vector<16x128xbf16>
    %cst_43 = arith.constant dense<0.000000e+00> : vector<8x128xf32>
    %95 = tpu.matmul %93, %94, %cst_43 {dimension_numbers = #tpu.dot_dimension_numbers<[1], [0], [0], [1], [0, 0, 1, 1], [], []>} : vector<8x16xbf16>, vector<16x128xbf16>, vector<8x128xf32> -> vector<8x128xf32>
    %cst_44 = arith.constant 0.000000e+00 : f32
    %96 = vector.broadcast %cst_44 : f32 to vector<8x128xf32>
    %97 = arith.maximumf %95, %96 : vector<8x128xf32>
    %98 = arith.addf %42, %97 : vector<8x128xf32>
    %cst_45 = arith.constant 0.000000e+00 : f32
    %99 = vector.broadcast %cst_45 : f32 to vector<8x128xf32>
    %100 = arith.maximumf %98, %99 : vector<8x128xf32>
    %101 = arith.truncf %71 : vector<16x128xf32> to vector<16x128xbf16>
    %c0_46 = arith.constant 0 : index
    %c0_47 = arith.constant 0 : index
    %102 = vector.load %arg6[%c0_46, %c0_47] : memref<128x128xbf16, #tpu.memory_space<vmem>>, vector<128x128xbf16>
    %cst_48 = arith.constant dense<0.000000e+00> : vector<16x128xf32>
    %103 = tpu.matmul %101, %102, %cst_48 {dimension_numbers = #tpu.dot_dimension_numbers<[1], [0], [0], [1], [0, 0, 1, 1], [], []>} : vector<16x128xbf16>, vector<128x128xbf16>, vector<16x128xf32> -> vector<16x128xf32>
    %104 = arith.addf %103, %10 : vector<16x128xf32>
    %105 = arith.truncf %100 : vector<8x128xf32> to vector<8x128xbf16>
    %c0_49 = arith.constant 0 : index
    %c0_50 = arith.constant 0 : index
    %106 = vector.load %arg8[%c0_49, %c0_50] : memref<128x256xbf16, #tpu.memory_space<vmem>>, vector<128x256xbf16>
    %cst_51 = arith.constant dense<0.000000e+00> : vector<8x256xf32>
    %107 = tpu.matmul %105, %106, %cst_51 {dimension_numbers = #tpu.dot_dimension_numbers<[1], [0], [0], [1], [0, 0, 1, 1], [], []>} : vector<8x128xbf16>, vector<128x256xbf16>, vector<8x256xf32> -> vector<8x256xf32>
    %108 = arith.addf %107, %13 : vector<8x256xf32>
    %109 = vector.extract_strided_slice %108 {offsets = [0, 0], sizes = [8, 128], strides = [1, 1]} : vector<8x256xf32> to vector<8x128xf32>
    %110 = vector.extract_strided_slice %108 {offsets = [0, 128], sizes = [8, 128], strides = [1, 1]} : vector<8x256xf32> to vector<8x128xf32>
    %cst_52 = arith.constant dense<0.000000e+00> : vector<16x8xf32>
    %111 = tpu.matmul %104, %109, %cst_52 {dimension_numbers = #tpu.dot_dimension_numbers<[1], [1], [0], [0], [0, 0, 1, 0], [], []>} : vector<16x128xf32>, vector<8x128xf32>, vector<16x8xf32> -> vector<16x8xf32>
    %cst_53 = arith.constant dense<0xFF800000> : vector<16xf32>
    %112 = vector.multi_reduction <maximumf>, %111, %cst_53 [1] : vector<16x8xf32> to vector<16xf32>
    %113 = vector.shape_cast %112 : vector<16xf32> to vector<16x1xf32>
    %114 = vector.broadcast %113 : vector<16x1xf32> to vector<16x8xf32>
    %115 = arith.subf %111, %114 : vector<16x8xf32>
    %116 = math.exp %115 : vector<16x8xf32>
    %cst_54 = arith.constant dense<0.000000e+00> : vector<16xf32>
    %117 = vector.multi_reduction <add>, %116, %cst_54 [1] : vector<16x8xf32> to vector<16xf32>
    %118 = vector.shape_cast %117 : vector<16xf32> to vector<16x1xf32>
    %119 = tpu.reciprocal %118 {approx = true} : vector<16x1xf32> -> vector<16x1xf32>
    %120 = vector.broadcast %119 : vector<16x1xf32> to vector<16x8xf32>
    %121 = arith.mulf %116, %120 : vector<16x8xf32>
    %122 = arith.truncf %121 : vector<16x8xf32> to vector<16x8xbf16>
    %123 = arith.truncf %110 : vector<8x128xf32> to vector<8x128xbf16>
    %cst_55 = arith.constant dense<0.000000e+00> : vector<16x128xf32>
    %124 = tpu.matmul %122, %123, %cst_55 {dimension_numbers = #tpu.dot_dimension_numbers<[1], [0], [0], [1], [0, 0, 1, 1], [], []>} : vector<16x8xbf16>, vector<8x128xbf16>, vector<16x128xf32> -> vector<16x128xf32>
    %cst_56 = arith.constant 0.000000e+00 : f32
    %125 = vector.broadcast %cst_56 : f32 to vector<16x128xf32>
    %126 = arith.maximumf %124, %125 : vector<16x128xf32>
    %127 = arith.addf %71, %126 : vector<16x128xf32>
    %cst_57 = arith.constant 0.000000e+00 : f32
    %128 = vector.broadcast %cst_57 : f32 to vector<16x128xf32>
    %129 = arith.maximumf %127, %128 : vector<16x128xf32>
    %c0_58 = arith.constant 0 : index
    %c0_59 = arith.constant 0 : index
    %130 = vector.load %arg10[%c0_58, %c0_59] : memref<8x128xf32, #tpu.memory_space<vmem>>, vector<8x128xf32>
    tpu.vector_store %arg10[%c0_58, %c0_59], %100 {strides = array<i32>} : memref<8x128xf32, #tpu.memory_space<vmem>>, vector<8x128xf32>,
    %c0_60 = arith.constant 0 : index
    %c0_61 = arith.constant 0 : index
    %131 = vector.load %arg11[%c0_60, %c0_61] : memref<16x128xf32, #tpu.memory_space<vmem>>, vector<16x128xf32>
    tpu.vector_store %arg11[%c0_60, %c0_61], %129 {strides = array<i32>} : memref<16x128xf32, #tpu.memory_space<vmem>>, vector<16x128xf32>,
    return
  }
}

</mosaic_0001>

<llo_original>
// kernel: sentence_function_interaction.1
$region0: #{sentence_function_interaction.1}
  #allocation0 [shape = 'u32[]', space=smem, size = 0x4, offset = 0x4, fixed_abs, tag = 'smem constant byte address 0x4 - core index']
  #allocation1 [shape = 'u32[72,128]{1,0:T(1,128)}', space=vmem, size = 0x9000, scoped, tag = 'internal scratch']
  %s0 = inlined_call_operand.vmem [shape: f32[8,128], index: 0, kind: input, shape index: {}, may-alias: {0,10}]
  %s1 = inlined_call_operand.vmem [shape: f32[16,128], index: 1, kind: input, shape index: {}, may-alias: {1,11}]
  %s2 = inlined_call_operand.hbm [shape: bf16[128,128], index: 2, kind: input, shape index: {}]
  %s3 = inlined_call_operand.vmem [shape: f32[1,128], index: 3, kind: input, shape index: {}]
  %s4 = inlined_call_operand.hbm [shape: bf16[128,256], index: 4, kind: input, shape index: {}]
  %s5 = inlined_call_operand.vmem [shape: f32[1,256], index: 5, kind: input, shape index: {}]
  %s6 = inlined_call_operand.hbm [shape: bf16[128,128], index: 6, kind: input, shape index: {}]
  %s7 = inlined_call_operand.vmem [shape: f32[1,128], index: 7, kind: input, shape index: {}]
  %s8 = inlined_call_operand.hbm [shape: bf16[128,256], index: 8, kind: input, shape index: {}]
  %s9 = inlined_call_operand.vmem [shape: f32[1,256], index: 9, kind: input, shape index: {}]
  %s10 = inlined_call_operand.vmem [shape: f32[8,128], index: 10, kind: output, shape index: {0}, may-alias: {0,10}]
  %s11 = inlined_call_operand.vmem [shape: f32[16,128], index: 11, kind: output, shape index: {1}, may-alias: {1,11}]
  %12 = xla_tuple %s10, %s11
  %s13 = sld [smem:[#allocation0]]
  $region74: #{sentence_function_interaction.1} parent=0
    _
  %s15 = ssub.s32 1, %s13
  %s16 = scalar_select 0, %s15, %s13
  $region1: #{sentence_function_interaction.1} parent=0
    #allocation2 [shape = 'u8[32768]{0}', space=vmem, size = 0x8000, scoped, tag = 'input window, operand 2, single buffered']
    #allocation3 [shape = 's32[1]{0}', space=sflag, size = 0x4, scoped, tag = 'scoped memory for sentence_function_interaction.1']
    #allocation4 [shape = 'u8[65536]{0}', space=vmem, size = 0x10000, scoped, tag = 'input window, operand 4, single buffered']
    #allocation5 [shape = 's32[1]{0}', space=sflag, size = 0x4, scoped, tag = 'scoped memory for sentence_function_interaction.1']
    #allocation6 [shape = 'u8[32768]{0}', space=vmem, size = 0x8000, scoped, tag = 'input window, operand 6, single buffered']
    #allocation7 [shape = 'u8[65536]{0}', space=vmem, size = 0x10000, scoped, tag = 'input window, operand 8, single buffered']
    #allocation8 [shape = 's32[1]{0}', space=sflag, size = 0x4, scoped, tag = 'scoped memory for sentence_function_interaction.1']
    %17 = vsyncpa [#allocation3], 0
    %18 = vsyncpa [#allocation5], 0
    %19 = vsyncpa [#allocation8], 0
    // Predicated region
    $region2: #{sentence_function_interaction.1} parent=1 // pred_check
      _
    $region3: #{sentence_function_interaction.1} parent=1 // pred_check_branch
      %21 = sbr.rel (0) target = $region5
    $region4: #{sentence_function_interaction.1} parent=1 // pred_region
      _
    $region5: #{sentence_function_interaction.1} parent=1 // pred_fallthru
      _
    // Predicated region
    $region6: #{sentence_function_interaction.1} parent=1 // pred_check
      _
    $region7: #{sentence_function_interaction.1} parent=1 // pred_check_branch
      %23 = sbr.rel (0) target = $region9
    $region8: #{sentence_function_interaction.1} parent=1 // pred_region
      _
    $region9: #{sentence_function_interaction.1} parent=1 // pred_fallthru
      _
    // Predicated region
    $region10: #{sentence_function_interaction.1} parent=1 // pred_check
      _
    $region11: #{sentence_function_interaction.1} parent=1 // pred_check_branch
      %25 = sbr.rel (0) target = $region13
    $region12: #{sentence_function_interaction.1} parent=1 // pred_region
      %27 = vsyncadd [#allocation3], 0
      %s28 = sshll.u32 %s2, 4
      %s29 = int_to_ptr.hbm [resolvable:$true] %s28
      %s30 = sshll.u32 [#allocation2], 4
      %s31 = int_to_ptr.vmem [resolvable:$true] %s30
      %36 = dma.hbm_to_vmem [thread:$0]  %s29, 1024, %s31, [#allocation3], 64, 64, 4
    $region13: #{sentence_function_interaction.1} parent=1 // pred_fallthru
      _
    // Predicated region
    $region14: #{sentence_function_interaction.1} parent=1 // pred_check
      _
    $region15: #{sentence_function_interaction.1} parent=1 // pred_check_branch
      %38 = sbr.rel (0) target = $region17
    $region16: #{sentence_function_interaction.1} parent=1 // pred_region
      _
    $region17: #{sentence_function_interaction.1} parent=1 // pred_fallthru
      _
    // Predicated region
    $region18: #{sentence_function_interaction.1} parent=1 // pred_check
      _
    $region19: #{sentence_function_interaction.1} parent=1 // pred_check_branch
      %40 = sbr.rel (0) target = $region21
    $region20: #{sentence_function_interaction.1} parent=1 // pred_region
      %42 = vsyncadd [#allocation5], 0
      %s43 = sshll.u32 %s4, 4
      %s44 = int_to_ptr.hbm [resolvable:$true] %s43
      %s45 = sshll.u32 [#allocation4], 4
      %s46 = int_to_ptr.vmem [resolvable:$true] %s45
      %51 = dma.hbm_to_vmem [thread:$0]  %s44, 2048, %s46, [#allocation5], 128, 128, 8
    $region21: #{sentence_function_interaction.1} parent=1 // pred_fallthru
      _
    // Predicated region
    $region22: #{sentence_function_interaction.1} parent=1 // pred_check
      _
    $region23: #{sentence_function_interaction.1} parent=1 // pred_check_branch
      %53 = sbr.rel (0) target = $region25
    $region24: #{sentence_function_interaction.1} parent=1 // pred_region
      _
    $region25: #{sentence_function_interaction.1} parent=1 // pred_fallthru
      _
    // Predicated region
    $region26: #{sentence_function_interaction.1} parent=1 // pred_check
      _
    $region27: #{sentence_function_interaction.1} parent=1 // pred_check_branch
      %55 = sbr.rel (0) target = $region29
    $region28: #{sentence_function_interaction.1} parent=1 // pred_region
      %57 = vsyncadd [#allocation5], 0
      %s58 = sshll.u32 %s6, 4
      %s59 = int_to_ptr.hbm [resolvable:$true] %s58
      %s60 = sshll.u32 [#allocation6], 4
      %s61 = int_to_ptr.vmem [resolvable:$true] %s60
      %66 = dma.hbm_to_vmem [thread:$0]  %s59, 1024, %s61, [#allocation5], 64, 64, 4
    $region29: #{sentence_function_interaction.1} parent=1 // pred_fallthru
      _
    // Predicated region
    $region30: #{sentence_function_interaction.1} parent=1 // pred_check
      _
    $region31: #{sentence_function_interaction.1} parent=1 // pred_check_branch
      %68 = sbr.rel (0) target = $region33
    $region32: #{sentence_function_interaction.1} parent=1 // pred_region
      _
    $region33: #{sentence_function_interaction.1} parent=1 // pred_fallthru
      _
    // Predicated region
    $region34: #{sentence_function_interaction.1} parent=1 // pred_check
      _
    $region35: #{sentence_function_interaction.1} parent=1 // pred_check_branch
      %70 = sbr.rel (0) target = $region37
    $region36: #{sentence_function_interaction.1} parent=1 // pred_region
      %72 = vsyncadd [#allocation8], 0
      %s73 = sshll.u32 %s8, 4
      %s74 = int_to_ptr.hbm [resolvable:$true] %s73
      %s75 = sshll.u32 [#allocation7], 4
      %s76 = int_to_ptr.vmem [resolvable:$true] %s75
      %81 = dma.hbm_to_vmem [thread:$0]  %s74, 2048, %s76, [#allocation8], 128, 128, 8
    $region37: #{sentence_function_interaction.1} parent=1 // pred_fallthru
      _
    // Predicated region
    $region38: #{sentence_function_interaction.1} parent=1 // pred_check
      _
    $region39: #{sentence_function_interaction.1} parent=1 // pred_check_branch
      %83 = sbr.rel (0) target = $region41
    $region40: #{sentence_function_interaction.1} parent=1 // pred_region
      _
    $region41: #{sentence_function_interaction.1} parent=1 // pred_fallthru
      _
    // Predicated region
    $region42: #{sentence_function_interaction.1} parent=1 // pred_check
      _
    $region43: #{sentence_function_interaction.1} parent=1 // pred_check_branch
      %85 = sbr.rel (0) target = $region45
    $region44: #{sentence_function_interaction.1} parent=1 // pred_region
      %87 = dma.done [#allocation3], 1024
    $region45: #{sentence_function_interaction.1} parent=1 // pred_fallthru
      _
    // Predicated region
    $region46: #{sentence_function_interaction.1} parent=1 // pred_check
      _
    $region47: #{sentence_function_interaction.1} parent=1 // pred_check_branch
      %89 = sbr.rel (0) target = $region49
    $region48: #{sentence_function_interaction.1} parent=1 // pred_region
      %91 = dma.done [#allocation5], 2048
    $region49: #{sentence_function_interaction.1} parent=1 // pred_fallthru
      _
    // Predicated region
    $region50: #{sentence_function_interaction.1} parent=1 // pred_check
      _
    $region51: #{sentence_function_interaction.1} parent=1 // pred_check_branch
      %93 = sbr.rel (0) target = $region53
    $region52: #{sentence_function_interaction.1} parent=1 // pred_region
      %95 = dma.done [#allocation5], 1024
    $region53: #{sentence_function_interaction.1} parent=1 // pred_fallthru
      _
    // Predicated region
    $region54: #{sentence_function_interaction.1} parent=1 // pred_check
      _
    $region55: #{sentence_function_interaction.1} parent=1 // pred_check_branch
      %97 = sbr.rel (0) target = $region57
    $region56: #{sentence_function_interaction.1} parent=1 // pred_region
      %99 = dma.done [#allocation8], 2048
    $region57: #{sentence_function_interaction.1} parent=1 // pred_fallthru
      _
    %v101 = vld [vmem:[%s0] sm:$0xff]
    %v102 = vld [vmem:[%s1] sm:$0xff]
    %v103 = vld [vmem:[%s1 + $0x8] sm:$0xff]
    %v104 = vld [vmem:[%s3] sm:$0x1]
    %v106 = vperm.slane %v104, 0
    %v108 = vld [vmem:[%s5] sm:$0x3]
    %v110 = vperm.slane %v108, 0
    %v111 = vperm.slane %v108, 1
    %v114 = vld [vmem:[%s7] sm:$0x1]
    %v116 = vperm.slane %v114, 0
    %v118 = vld [vmem:[%s9] sm:$0x3]
    %v120 = vperm.slane %v118, 0
    %v121 = vperm.slane %v118, 1
    %v124 = vpack.c.bf16 %v101, %v101
    %v125 = vld [vmem:[#allocation2] sm:$0xf]
    %v126 = vld [vmem:[#allocation2 + $0x4] sm:$0xf]
    %v127 = vld [vmem:[#allocation2 + $0x8] sm:$0xf]
    %v128 = vld [vmem:[#allocation2 + $0xc] sm:$0xf]
    %v129 = vld [vmem:[#allocation2 + $0x10] sm:$0xf]
    %v130 = vld [vmem:[#allocation2 + $0x14] sm:$0xf]
    %v131 = vld [vmem:[#allocation2 + $0x18] sm:$0xf]
    %v132 = vld [vmem:[#allocation2 + $0x1c] sm:$0xf]
    %v133 = vld [vmem:[#allocation2 + $0x20] sm:$0xf]
    %v134 = vld [vmem:[#allocation2 + $0x24] sm:$0xf]
    %v135 = vld [vmem:[#allocation2 + $0x28] sm:$0xf]
    %v136 = vld [vmem:[#allocation2 + $0x2c] sm:$0xf]
    %v137 = vld [vmem:[#allocation2 + $0x30] sm:$0xf]
    %v138 = vld [vmem:[#allocation2 + $0x34] sm:$0xf]
    %v139 = vld [vmem:[#allocation2 + $0x38] sm:$0xf]
    %v140 = vld [vmem:[#allocation2 + $0x3c] sm:$0xf]
    %v157 = vunpack.c.l.b16 %v125
    %v158 = vunpack.c.l.b16 %v126
    %v159 = vunpack.c.l.b16 %v127
    %v160 = vunpack.c.l.b16 %v128
    %v161 = vunpack.c.l.b16 %v129
    %v162 = vunpack.c.l.b16 %v130
    %v163 = vunpack.c.l.b16 %v131
    %v164 = vunpack.c.l.b16 %v132
    %v165 = vunpack.c.l.b16 %v133
    %v166 = vunpack.c.l.b16 %v134
    %v167 = vunpack.c.l.b16 %v135
    %v168 = vunpack.c.l.b16 %v136
    %v169 = vunpack.c.l.b16 %v137
    %v170 = vunpack.c.l.b16 %v138
    %v171 = vunpack.c.l.b16 %v139
    %v172 = vunpack.c.l.b16 %v140
    %v173 = vpack.c.b16 %v158, %v157
    %v174 = vpack.c.b16 %v160, %v159
    %v175 = vpack.c.b16 %v162, %v161
    %v176 = vpack.c.b16 %v164, %v163
    %v177 = vpack.c.b16 %v166, %v165
    %v178 = vpack.c.b16 %v168, %v167
    %v179 = vpack.c.b16 %v170, %v169
    %v180 = vpack.c.b16 %v172, %v171
    %189 = vmatpush.bf16.msra.mxu0 %v180
    %190 = vmatpush.bf16.msra.mxu0 %v179
    %191 = vmatpush.bf16.msra.mxu0 %v178
    %192 = vmatpush.bf16.msra.mxu0 %v177
    %193 = vmatpush.bf16.msra.mxu0 %v176
    %194 = vmatpush.bf16.msra.mxu0 %v175
    %195 = vmatpush.bf16.msra.mxu0 %v174
    %196 = vmatpush.bf16.msra.mxu0 %v173
    %197 = vmatmul.bf16.gmra.mxu0 %v124
    %v198 = vpop.f32.mrf.mxu0
    %v199 = vadd.f32 %v106, %v198
    %v200 = vpop.f32.mrf.mxu0
    %201 = vdwg.mxu0
    %v202 = vpack.c.bf16 %v103, %v102
    %v203 = vld [vmem:[#allocation4] sm:$0xff]
    %v204 = vld [vmem:[#allocation4 + $0x8] sm:$0xff]
    %v205 = vld [vmem:[#allocation4 + $0x10] sm:$0xff]
    %v206 = vld [vmem:[#allocation4 + $0x18] sm:$0xff]
    %v207 = vld [vmem:[#allocation4 + $0x20] sm:$0xff]
    %v208 = vld [vmem:[#allocation4 + $0x28] sm:$0xff]
    %v209 = vld [vmem:[#allocation4 + $0x30] sm:$0xff]
    %v210 = vld [vmem:[#allocation4 + $0x38] sm:$0xff]
    %v211 = vld [vmem:[#allocation4 + $0x40] sm:$0xff]
    %v212 = vld [vmem:[#allocation4 + $0x48] sm:$0xff]
    %v213 = vld [vmem:[#allocation4 + $0x50] sm:$0xff]
    %v214 = vld [vmem:[#allocation4 + $0x58] sm:$0xff]
    %v215 = vld [vmem:[#allocation4 + $0x60] sm:$0xff]
    %v216 = vld [vmem:[#allocation4 + $0x68] sm:$0xff]
    %v217 = vld [vmem:[#allocation4 + $0x70] sm:$0xff]
    %v218 = vld [vmem:[#allocation4 + $0x78] sm:$0xff]
    %v235 = vunpack.c.l.b16 %v203
    %v236 = vunpack.c.h.b16 %v203
    %v237 = vunpack.c.l.b16 %v204
    %v238 = vunpack.c.h.b16 %v204
    %v239 = vunpack.c.l.b16 %v205
    %v240 = vunpack.c.h.b16 %v205
    %v241 = vunpack.c.l.b16 %v206
    %v242 = vunpack.c.h.b16 %v206
    %v243 = vunpack.c.l.b16 %v207
    %v244 = vunpack.c.h.b16 %v207
    %v245 = vunpack.c.l.b16 %v208
    %v246 = vunpack.c.h.b16 %v208
    %v247 = vunpack.c.l.b16 %v209
    %v248 = vunpack.c.h.b16 %v209
    %v249 = vunpack.c.l.b16 %v210
    %v250 = vunpack.c.h.b16 %v210
    %v251 = vunpack.c.l.b16 %v211
    %v252 = vunpack.c.h.b16 %v211
    %v253 = vunpack.c.l.b16 %v212
    %v254 = vunpack.c.h.b16 %v212
    %v255 = vunpack.c.l.b16 %v213
    %v256 = vunpack.c.h.b16 %v213
    %v257 = vunpack.c.l.b16 %v214
    %v258 = vunpack.c.h.b16 %v214
    %v259 = vunpack.c.l.b16 %v215
    %v260 = vunpack.c.h.b16 %v215
    %v261 = vunpack.c.l.b16 %v216
    %v262 = vunpack.c.h.b16 %v216
    %v263 = vunpack.c.l.b16 %v217
    %v264 = vunpack.c.h.b16 %v217
    %v265 = vunpack.c.l.b16 %v218
    %v266 = vunpack.c.h.b16 %v218
    %v267 = vpack.c.b16 %v237, %v235
    %v268 = vpack.c.b16 %v238, %v236
    %v269 = vpack.c.b16 %v241, %v239
    %v270 = vpack.c.b16 %v242, %v240
    %v271 = vpack.c.b16 %v245, %v243
    %v272 = vpack.c.b16 %v246, %v244
    %v273 = vpack.c.b16 %v249, %v247
    %v274 = vpack.c.b16 %v250, %v248
    %v275 = vpack.c.b16 %v253, %v251
    %v276 = vpack.c.b16 %v254, %v252
    %v277 = vpack.c.b16 %v257, %v255
    %v278 = vpack.c.b16 %v258, %v256
    %v279 = vpack.c.b16 %v261, %v259
    %v280 = vpack.c.b16 %v262, %v260
    %v281 = vpack.c.b16 %v265, %v263
    %v282 = vpack.c.b16 %v266, %v264
    %299 = vmatpush.bf16.msra.mxu0 %v281
    %300 = vmatpush.bf16.msra.mxu0 %v279
    %301 = vmatpush.bf16.msra.mxu0 %v277
    %302 = vmatpush.bf16.msra.mxu0 %v275
    %303 = vmatpush.bf16.msra.mxu0 %v273
    %304 = vmatpush.bf16.msra.mxu0 %v271
    %305 = vmatpush.bf16.msra.mxu0 %v269
    %306 = vmatpush.bf16.msra.mxu0 %v267
    %307 = vmatmul.bf16.gmra.mxu0 %v202
    %v308 = vpop.f32.mrf.mxu0
    %v309 = vadd.f32 %v110, %v308
    %v310 = vpop.f32.mrf.mxu0
    %v311 = vadd.f32 %v110, %v310
    %312 = vdwg.mxu0
    %313 = vmatpush.bf16.msra.mxu0 %v282
    %314 = vmatpush.bf16.msra.mxu0 %v280
    %315 = vmatpush.bf16.msra.mxu0 %v278
    %316 = vmatpush.bf16.msra.mxu0 %v276
    %317 = vmatpush.bf16.msra.mxu0 %v274
    %318 = vmatpush.bf16.msra.mxu0 %v272
    %319 = vmatpush.bf16.msra.mxu0 %v270
    %320 = vmatpush.bf16.msra.mxu0 %v268
    %321 = vmatmul.bf16.gmra.mxu0 %v202
    %v322 = vpop.f32.mrf.mxu0
    %v323 = vadd.f32 %v111, %v322
    %v324 = vpop.f32.mrf.mxu0
    %v325 = vadd.f32 %v111, %v324
    %326 = vdwg.mxu0
    %327 = vmatpush.xpose.msra.mxu0 0.0
    %328 = vmatpush.xpose.msra.mxu0 0.0
    %329 = vmatpush.xpose.msra.mxu0 0.0
    %330 = vmatpush.xpose.msra.mxu0 0.0
    %331 = vmatpush.xpose.msra.mxu0 0.0
    %332 = vmatpush.xpose.msra.mxu0 0.0
    %333 = vmatpush.xpose.msra.mxu0 0.0
    %334 = vmatpush.xpose.msra.mxu0 0.0
    %335 = vmatpush.xpose.msra.mxu0 0.0
    %336 = vmatpush.xpose.msra.mxu0 0.0
    %337 = vmatpush.xpose.msra.mxu0 0.0
    %338 = vmatpush.xpose.msra.mxu0 0.0
    %339 = vmatpush.xpose.msra.mxu0 0.0
    %340 = vmatpush.xpose.msra.mxu0 0.0
    %341 = vmatpush.xpose.msra.mxu0 %v311
    %342 = vmatpush.xpose.msra.mxu0 %v309
    %343 = vmatmul.f32.gmra.mxu0 %v199
    %v344 = vpop.f32.mrf.mxu0
    %v345 = vadd.f32 0.0, %v344
    %346 = vdwg.mxu0
    %vm347 = vcmask 130048
    %v348 = vsel %vm347, %v345, -inf
    %349 = vmax.xlane.f32.xlu0 %v348
    %v350 = vpop.xlane.xlu0 %349
    %v351 = vsub.f32 %v345, %v350
    %v352 = vmul.f32 %v351, 1.442695
    %v353 = vpow.pop %v352
    %v354 = vsel %vm347, %v353, 0.0
    %355 = vadd.xlane.f32.xlu0 %v354
    %v356 = vpop.xlane.xlu0 %355
    %v357 = vrcp.pop %v356
    %v358 = vmul.f32 %v353, %v357
    %v359 = vpack.c.bf16 %v358, %v358
    %v360 = vpack.c.bf16 %v325, %v323
    %v362 = vsel %vm347, %v359, 0
    %364 = vmatpush.bf16.msra.mxu0 0
    %365 = vmatpush.bf16.msra.mxu0 0
    %366 = vmatpush.bf16.msra.mxu0 0
    %367 = vmatpush.bf16.msra.mxu0 0
    %368 = vmatpush.bf16.msra.mxu0 0
    %369 = vmatpush.bf16.msra.mxu0 0
    %370 = vmatpush.bf16.msra.mxu0 0
    %371 = vmatpush.bf16.msra.mxu0 %v360
    %372 = vmatmul.bf16.gmra.mxu0 %v362
    %v373 = vpop.f32.mrf.mxu0
    %v374 = vadd.f32 0.0, %v373
    %v375 = vpop.f32.mrf.mxu0
    %376 = vdwg.mxu0
    %v377 = vmax.f32 %v374, 0.0
    %v378 = vadd.f32 %v101, %v377
    %v379 = vmax.f32 %v378, 0.0
    %v380 = vld [vmem:[#allocation6] sm:$0xf]
    %v381 = vld [vmem:[#allocation6 + $0x4] sm:$0xf]
    %v382 = vld [vmem:[#allocation6 + $0x8] sm:$0xf]
    %v383 = vld [vmem:[#allocation6 + $0xc] sm:$0xf]
    %v384 = vld [vmem:[#allocation6 + $0x10] sm:$0xf]
    %v385 = vld [vmem:[#allocation6 + $0x14] sm:$0xf]
    %v386 = vld [vmem:[#allocation6 + $0x18] sm:$0xf]
    %v387 = vld [vmem:[#allocation6 + $0x1c] sm:$0xf]
    %v388 = vld [vmem:[#allocation6 + $0x20] sm:$0xf]
    %v389 = vld [vmem:[#allocation6 + $0x24] sm:$0xf]
    %v390 = vld [vmem:[#allocation6 + $0x28] sm:$0xf]
    %v391 = vld [vmem:[#allocation6 + $0x2c] sm:$0xf]
    %v392 = vld [vmem:[#allocation6 + $0x30] sm:$0xf]
    %v393 = vld [vmem:[#allocation6 + $0x34] sm:$0xf]
    %v394 = vld [vmem:[#allocation6 + $0x38] sm:$0xf]
    %v395 = vld [vmem:[#allocation6 + $0x3c] sm:$0xf]
    %v412 = vunpack.c.l.b16 %v380
    %v413 = vunpack.c.l.b16 %v381
    %v414 = vunpack.c.l.b16 %v382
    %v415 = vunpack.c.l.b16 %v383
    %v416 = vunpack.c.l.b16 %v384
    %v417 = vunpack.c.l.b16 %v385
    %v418 = vunpack.c.l.b16 %v386
    %v419 = vunpack.c.l.b16 %v387
    %v420 = vunpack.c.l.b16 %v388
    %v421 = vunpack.c.l.b16 %v389
    %v422 = vunpack.c.l.b16 %v390
    %v423 = vunpack.c.l.b16 %v391
    %v424 = vunpack.c.l.b16 %v392
    %v425 = vunpack.c.l.b16 %v393
    %v426 = vunpack.c.l.b16 %v394
    %v427 = vunpack.c.l.b16 %v395
    %v428 = vpack.c.b16 %v413, %v412
    %v429 = vpack.c.b16 %v415, %v414
    %v430 = vpack.c.b16 %v417, %v416
    %v431 = vpack.c.b16 %v419, %v418
    %v432 = vpack.c.b16 %v421, %v420
    %v433 = vpack.c.b16 %v423, %v422
    %v434 = vpack.c.b16 %v425, %v424
    %v435 = vpack.c.b16 %v427, %v426
    %444 = vmatpush.bf16.msra.mxu0 %v435
    %445 = vmatpush.bf16.msra.mxu0 %v434
    %446 = vmatpush.bf16.msra.mxu0 %v433
    %447 = vmatpush.bf16.msra.mxu0 %v432
    %448 = vmatpush.bf16.msra.mxu0 %v431
    %449 = vmatpush.bf16.msra.mxu0 %v430
    %450 = vmatpush.bf16.msra.mxu0 %v429
    %451 = vmatpush.bf16.msra.mxu0 %v428
    %452 = vmatmul.bf16.gmra.mxu0 %v202
    %v453 = vpop.f32.mrf.mxu0
    %v454 = vadd.f32 %v116, %v453
    %v455 = vpop.f32.mrf.mxu0
    %v456 = vadd.f32 %v116, %v455
    %457 = vdwg.mxu0
    %v458 = vpack.c.bf16 %v379, %v379
    %v459 = vld [vmem:[#allocation7] sm:$0xff]
    %v460 = vld [vmem:[#allocation7 + $0x8] sm:$0xff]
    %v461 = vld [vmem:[#allocation7 + $0x10] sm:$0xff]
    %v462 = vld [vmem:[#allocation7 + $0x18] sm:$0xff]
    %v463 = vld [vmem:[#allocation7 + $0x20] sm:$0xff]
    %v464 = vld [vmem:[#allocation7 + $0x28] sm:$0xff]
    %v465 = vld [vmem:[#allocation7 + $0x30] sm:$0xff]
    %v466 = vld [vmem:[#allocation7 + $0x38] sm:$0xff]
    %v467 = vld [vmem:[#allocation7 + $0x40] sm:$0xff]
    %v468 = vld [vmem:[#allocation7 + $0x48] sm:$0xff]
    %v469 = vld [vmem:[#allocation7 + $0x50] sm:$0xff]
    %v470 = vld [vmem:[#allocation7 + $0x58] sm:$0xff]
    %v471 = vld [vmem:[#allocation7 + $0x60] sm:$0xff]
    %v472 = vld [vmem:[#allocation7 + $0x68] sm:$0xff]
    %v473 = vld [vmem:[#allocation7 + $0x70] sm:$0xff]
    %v474 = vld [vmem:[#allocation7 + $0x78] sm:$0xff]
    %v491 = vunpack.c.l.b16 %v459
    %v492 = vunpack.c.h.b16 %v459
    %v493 = vunpack.c.l.b16 %v460
    %v494 = vunpack.c.h.b16 %v460
    %v495 = vunpack.c.l.b16 %v461
    %v496 = vunpack.c.h.b16 %v461
    %v497 = vunpack.c.l.b16 %v462
    %v498 = vunpack.c.h.b16 %v462
    %v499 = vunpack.c.l.b16 %v463
    %v500 = vunpack.c.h.b16 %v463
    %v501 = vunpack.c.l.b16 %v464
    %v502 = vunpack.c.h.b16 %v464
    %v503 = vunpack.c.l.b16 %v465
    %v504 = vunpack.c.h.b16 %v465
    %v505 = vunpack.c.l.b16 %v466
    %v506 = vunpack.c.h.b16 %v466
    %v507 = vunpack.c.l.b16 %v467
    %v508 = vunpack.c.h.b16 %v467
    %v509 = vunpack.c.l.b16 %v468
    %v510 = vunpack.c.h.b16 %v468
    %v511 = vunpack.c.l.b16 %v469
    %v512 = vunpack.c.h.b16 %v469
    %v513 = vunpack.c.l.b16 %v470
    %v514 = vunpack.c.h.b16 %v470
    %v515 = vunpack.c.l.b16 %v471
    %v516 = vunpack.c.h.b16 %v471
    %v517 = vunpack.c.l.b16 %v472
    %v518 = vunpack.c.h.b16 %v472
    %v519 = vunpack.c.l.b16 %v473
    %v520 = vunpack.c.h.b16 %v473
    %v521 = vunpack.c.l.b16 %v474
    %v522 = vunpack.c.h.b16 %v474
    %v523 = vpack.c.b16 %v493, %v491
    %v524 = vpack.c.b16 %v494, %v492
    %v525 = vpack.c.b16 %v497, %v495
    %v526 = vpack.c.b16 %v498, %v496
    %v527 = vpack.c.b16 %v501, %v499
    %v528 = vpack.c.b16 %v502, %v500
    %v529 = vpack.c.b16 %v505, %v503
    %v530 = vpack.c.b16 %v506, %v504
    %v531 = vpack.c.b16 %v509, %v507
    %v532 = vpack.c.b16 %v510, %v508
    %v533 = vpack.c.b16 %v513, %v511
    %v534 = vpack.c.b16 %v514, %v512
    %v535 = vpack.c.b16 %v517, %v515
    %v536 = vpack.c.b16 %v518, %v516
    %v537 = vpack.c.b16 %v521, %v519
    %v538 = vpack.c.b16 %v522, %v520
    %555 = vmatpush.bf16.msra.mxu0 %v537
    %556 = vmatpush.bf16.msra.mxu0 %v535
    %557 = vmatpush.bf16.msra.mxu0 %v533
    %558 = vmatpush.bf16.msra.mxu0 %v531
    %559 = vmatpush.bf16.msra.mxu0 %v529
    %560 = vmatpush.bf16.msra.mxu0 %v527
    %561 = vmatpush.bf16.msra.mxu0 %v525
    %562 = vmatpush.bf16.msra.mxu0 %v523
    %563 = vmatmul.bf16.gmra.mxu0 %v458
    %v564 = vpop.f32.mrf.mxu0
    %v565 = vadd.f32 %v120, %v564
    %v566 = vpop.f32.mrf.mxu0
    %567 = vdwg.mxu0
    %568 = vmatpush.bf16.msra.mxu0 %v538
    %569 = vmatpush.bf16.msra.mxu0 %v536
    %570 = vmatpush.bf16.msra.mxu0 %v534
    %571 = vmatpush.bf16.msra.mxu0 %v532
    %572 = vmatpush.bf16.msra.mxu0 %v530
    %573 = vmatpush.bf16.msra.mxu0 %v528
    %574 = vmatpush.bf16.msra.mxu0 %v526
    %575 = vmatpush.bf16.msra.mxu0 %v524
    %576 = vmatmul.bf16.gmra.mxu0 %v458
    %v577 = vpop.f32.mrf.mxu0
    %v578 = vadd.f32 %v121, %v577
    %v579 = vpop.f32.mrf.mxu0
    %580 = vdwg.mxu0
    %581 = vmatpush.xpose.msra.mxu0 0.0
    %582 = vmatpush.xpose.msra.mxu0 0.0
    %583 = vmatpush.xpose.msra.mxu0 0.0
    %584 = vmatpush.xpose.msra.mxu0 0.0
    %585 = vmatpush.xpose.msra.mxu0 0.0
    %586 = vmatpush.xpose.msra.mxu0 0.0
    %587 = vmatpush.xpose.msra.mxu0 0.0
    %588 = vmatpush.xpose.msra.mxu0 0.0
    %589 = vmatpush.xpose.msra.mxu0 0.0
    %590 = vmatpush.xpose.msra.mxu0 0.0
    %591 = vmatpush.xpose.msra.mxu0 0.0
    %592 = vmatpush.xpose.msra.mxu0 0.0
    %593 = vmatpush.xpose.msra.mxu0 0.0
    %594 = vmatpush.xpose.msra.mxu0 0.0
    %595 = vmatpush.xpose.msra.mxu0 0.0
    %596 = vmatpush.xpose.msra.mxu0 %v565
    %597 = vmatmul.f32.gmra.mxu0 %v454
    %v598 = vpop.f32.mrf.mxu0
    %v599 = vadd.f32 0.0, %v598
    %600 = vmatmul.f32.gmra.mxu0 %v456
    %v601 = vpop.f32.mrf.mxu0
    %v602 = vadd.f32 0.0, %v601
    %603 = vdwg.mxu0
    %vm604 = vcmask 64512
    %v605 = vsel %vm604, %v599, -inf
    %606 = vmax.xlane.f32.xlu0 %v605
    %v607 = vpop.xlane.xlu0 %606
    %v608 = vsel %vm604, %v602, -inf
    %609 = vmax.xlane.f32.xlu0 %v608
    %v610 = vpop.xlane.xlu0 %609
    %v611 = vsub.f32 %v599, %v607
    %v612 = vsub.f32 %v602, %v610
    %v613 = vmul.f32 %v611, 1.442695
    %v614 = vpow.pop %v613
    %v615 = vmul.f32 %v612, 1.442695
    %v616 = vpow.pop %v615
    %v617 = vsel %vm604, %v614, 0.0
    %618 = vadd.xlane.f32.xlu0 %v617
    %v619 = vpop.xlane.xlu0 %618
    %v620 = vsel %vm604, %v616, 0.0
    %621 = vadd.xlane.f32.xlu0 %v620
    %v622 = vpop.xlane.xlu0 %621
    %v623 = vrcp.pop %v619
    %v624 = vrcp.pop %v622
    %v625 = vmul.f32 %v614, %v623
    %v626 = vmul.f32 %v616, %v624
    %v627 = vpack.c.bf16 %v626, %v625
    %v628 = vpack.c.bf16 %v578, %v578
    %v630 = vsel %vm604, %v627, 0
    %vm632 = vcmask 1043456
    %v634 = vsel %vm632, %v628, 0
    %636 = vmatpush.bf16.msra.mxu0 0
    %637 = vmatpush.bf16.msra.mxu0 0
    %638 = vmatpush.bf16.msra.mxu0 0
    %639 = vmatpush.bf16.msra.mxu0 0
    %640 = vmatpush.bf16.msra.mxu0 0
    %641 = vmatpush.bf16.msra.mxu0 0
    %642 = vmatpush.bf16.msra.mxu0 0
    %643 = vmatpush.bf16.msra.mxu0 %v634
    %644 = vmatmul.bf16.gmra.mxu0 %v630
    %v645 = vpop.f32.mrf.mxu0
    %v646 = vadd.f32 0.0, %v645
    %v647 = vpop.f32.mrf.mxu0
    %v648 = vadd.f32 0.0, %v647
    %649 = vdwg.mxu0
    %v650 = vmax.f32 %v646, 0.0
    %v651 = vmax.f32 %v648, 0.0
    %v652 = vadd.f32 %v102, %v650
    %v653 = vadd.f32 %v103, %v651
    %v654 = vmax.f32 %v652, 0.0
    %v655 = vmax.f32 %v653, 0.0
    %656 = vmatpush.bf16.msra.mxu0 %v180
    %657 = vmatpush.bf16.msra.mxu0 %v179
    %658 = vmatpush.bf16.msra.mxu0 %v178
    %659 = vmatpush.bf16.msra.mxu0 %v177
    %660 = vmatpush.bf16.msra.mxu0 %v176
    %661 = vmatpush.bf16.msra.mxu0 %v175
    %662 = vmatpush.bf16.msra.mxu0 %v174
    %663 = vmatpush.bf16.msra.mxu0 %v173
    %664 = vmatmul.bf16.gmra.mxu0 %v458
    %v665 = vpop.f32.mrf.mxu0
    %v666 = vadd.f32 %v106, %v665
    %v667 = vpop.f32.mrf.mxu0
    %668 = vdwg.mxu0
    %v669 = vpack.c.bf16 %v655, %v654
    %670 = vmatpush.bf16.msra.mxu0 %v281
    %671 = vmatpush.bf16.msra.mxu0 %v279
    %672 = vmatpush.bf16.msra.mxu0 %v277
    %673 = vmatpush.bf16.msra.mxu0 %v275
    %674 = vmatpush.bf16.msra.mxu0 %v273
    %675 = vmatpush.bf16.msra.mxu0 %v271
    %676 = vmatpush.bf16.msra.mxu0 %v269
    %677 = vmatpush.bf16.msra.mxu0 %v267
    %678 = vmatmul.bf16.gmra.mxu0 %v669
    %v679 = vpop.f32.mrf.mxu0
    %v680 = vadd.f32 %v110, %v679
    %v681 = vpop.f32.mrf.mxu0
    %v682 = vadd.f32 %v110, %v681
    %683 = vdwg.mxu0
    %684 = vmatpush.bf16.msra.mxu0 %v282
    %685 = vmatpush.bf16.msra.mxu0 %v280
    %686 = vmatpush.bf16.msra.mxu0 %v278
    %687 = vmatpush.bf16.msra.mxu0 %v276
    %688 = vmatpush.bf16.msra.mxu0 %v274
    %689 = vmatpush.bf16.msra.mxu0 %v272
    %690 = vmatpush.bf16.msra.mxu0 %v270
    %691 = vmatpush.bf16.msra.mxu0 %v268
    %692 = vmatmul.bf16.gmra.mxu0 %v669
    %v693 = vpop.f32.mrf.mxu0
    %v694 = vadd.f32 %v111, %v693
    %v695 = vpop.f32.mrf.mxu0
    %v696 = vadd.f32 %v111, %v695
    %697 = vdwg.mxu0
    %698 = vmatpush.xpose.msra.mxu0 0.0
    %699 = vmatpush.xpose.msra.mxu0 0.0
    %700 = vmatpush.xpose.msra.mxu0 0.0
    %701 = vmatpush.xpose.msra.mxu0 0.0
    %702 = vmatpush.xpose.msra.mxu0 0.0
    %703 = vmatpush.xpose.msra.mxu0 0.0
    %704 = vmatpush.xpose.msra.mxu0 0.0
    %705 = vmatpush.xpose.msra.mxu0 0.0
    %706 = vmatpush.xpose.msra.mxu0 0.0
    %707 = vmatpush.xpose.msra.mxu0 0.0
    %708 = vmatpush.xpose.msra.mxu0 0.0
    %709 = vmatpush.xpose.msra.mxu0 0.0
    %710 = vmatpush.xpose.msra.mxu0 0.0
    %711 = vmatpush.xpose.msra.mxu0 0.0
    %712 = vmatpush.xpose.msra.mxu0 %v682
    %713 = vmatpush.xpose.msra.mxu0 %v680
    %714 = vmatmul.f32.gmra.mxu0 %v666
    %v715 = vpop.f32.mrf.mxu0
    %v716 = vadd.f32 0.0, %v715
    %717 = vdwg.mxu0
    %v718 = vsel %vm347, %v716, -inf
    %719 = vmax.xlane.f32.xlu0 %v718
    %v720 = vpop.xlane.xlu0 %719
    %v721 = vsub.f32 %v716, %v720
    %v722 = vmul.f32 %v721, 1.442695
    %v723 = vpow.pop %v722
    %v724 = vsel %vm347, %v723, 0.0
    %725 = vadd.xlane.f32.xlu0 %v724
    %v726 = vpop.xlane.xlu0 %725
    %v727 = vrcp.pop %v726
    %v728 = vmul.f32 %v723, %v727
    %v729 = vpack.c.bf16 %v728, %v728
    %v730 = vpack.c.bf16 %v696, %v694
    %v732 = vsel %vm347, %v729, 0
    %734 = vmatpush.bf16.msra.mxu0 0
    %735 = vmatpush.bf16.msra.mxu0 0
    %736 = vmatpush.bf16.msra.mxu0 0
    %737 = vmatpush.bf16.msra.mxu0 0
    %738 = vmatpush.bf16.msra.mxu0 0
    %739 = vmatpush.bf16.msra.mxu0 0
    %740 = vmatpush.bf16.msra.mxu0 0
    %741 = vmatpush.bf16.msra.mxu0 %v730
    %742 = vmatmul.bf16.gmra.mxu0 %v732
    %v743 = vpop.f32.mrf.mxu0
    %v744 = vadd.f32 0.0, %v743
    %v745 = vpop.f32.mrf.mxu0
    %746 = vdwg.mxu0
    %v747 = vmax.f32 %v744, 0.0
    %v748 = vadd.f32 %v379, %v747
    %v749 = vmax.f32 %v748, 0.0
    %750 = vmatpush.bf16.msra.mxu0 %v435
    %751 = vmatpush.bf16.msra.mxu0 %v434
    %752 = vmatpush.bf16.msra.mxu0 %v433
    %753 = vmatpush.bf16.msra.mxu0 %v432
    %754 = vmatpush.bf16.msra.mxu0 %v431
    %755 = vmatpush.bf16.msra.mxu0 %v430
    %756 = vmatpush.bf16.msra.mxu0 %v429
    %757 = vmatpush.bf16.msra.mxu0 %v428
    %758 = vmatmul.bf16.gmra.mxu0 %v669
    %v759 = vpop.f32.mrf.mxu0
    %v760 = vadd.f32 %v116, %v759
    %v761 = vpop.f32.mrf.mxu0
    %v762 = vadd.f32 %v116, %v761
    %763 = vdwg.mxu0
    %v764 = vpack.c.bf16 %v749, %v749
    %765 = vmatpush.bf16.msra.mxu0 %v537
    %766 = vmatpush.bf16.msra.mxu0 %v535
    %767 = vmatpush.bf16.msra.mxu0 %v533
    %768 = vmatpush.bf16.msra.mxu0 %v531
    %769 = vmatpush.bf16.msra.mxu0 %v529
    %770 = vmatpush.bf16.msra.mxu0 %v527
    %771 = vmatpush.bf16.msra.mxu0 %v525
    %772 = vmatpush.bf16.msra.mxu0 %v523
    %773 = vmatmul.bf16.gmra.mxu0 %v764
    %v774 = vpop.f32.mrf.mxu0
    %v775 = vadd.f32 %v120, %v774
    %v776 = vpop.f32.mrf.mxu0
    %777 = vdwg.mxu0
    %778 = vmatpush.bf16.msra.mxu0 %v538
    %779 = vmatpush.bf16.msra.mxu0 %v536
    %780 = vmatpush.bf16.msra.mxu0 %v534
    %781 = vmatpush.bf16.msra.mxu0 %v532
    %782 = vmatpush.bf16.msra.mxu0 %v530
    %783 = vmatpush.bf16.msra.mxu0 %v528
    %784 = vmatpush.bf16.msra.mxu0 %v526
    %785 = vmatpush.bf16.msra.mxu0 %v524
    %786 = vmatmul.bf16.gmra.mxu0 %v764
    %v787 = vpop.f32.mrf.mxu0
    %v788 = vadd.f32 %v121, %v787
    %v789 = vpop.f32.mrf.mxu0
    %790 = vdwg.mxu0
    %791 = vmatpush.xpose.msra.mxu0 0.0
    %792 = vmatpush.xpose.msra.mxu0 0.0
    %793 = vmatpush.xpose.msra.mxu0 0.0
    %794 = vmatpush.xpose.msra.mxu0 0.0
    %795 = vmatpush.xpose.msra.mxu0 0.0
    %796 = vmatpush.xpose.msra.mxu0 0.0
    %797 = vmatpush.xpose.msra.mxu0 0.0
    %798 = vmatpush.xpose.msra.mxu0 0.0
    %799 = vmatpush.xpose.msra.mxu0 0.0
    %800 = vmatpush.xpose.msra.mxu0 0.0
    %801 = vmatpush.xpose.msra.mxu0 0.0
    %802 = vmatpush.xpose.msra.mxu0 0.0
    %803 = vmatpush.xpose.msra.mxu0 0.0
    %804 = vmatpush.xpose.msra.mxu0 0.0
    %805 = vmatpush.xpose.msra.mxu0 0.0
    %806 = vmatpush.xpose.msra.mxu0 %v775
    %807 = vmatmul.f32.gmra.mxu0 %v760
    %v808 = vpop.f32.mrf.mxu0
    %v809 = vadd.f32 0.0, %v808
    %810 = vmatmul.f32.gmra.mxu0 %v762
    %v811 = vpop.f32.mrf.mxu0
    %v812 = vadd.f32 0.0, %v811
    %813 = vdwg.mxu0
    %v814 = vsel %vm604, %v809, -inf
    %815 = vmax.xlane.f32.xlu0 %v814
    %v816 = vpop.xlane.xlu0 %815
    %v817 = vsel %vm604, %v812, -inf
    %818 = vmax.xlane.f32.xlu0 %v817
    %v819 = vpop.xlane.xlu0 %818
    %v820 = vsub.f32 %v809, %v816
    %v821 = vsub.f32 %v812, %v819
    %v822 = vmul.f32 %v820, 1.442695
    %v823 = vpow.pop %v822
    %v824 = vmul.f32 %v821, 1.442695
    %v825 = vpow.pop %v824
    %v826 = vsel %vm604, %v823, 0.0
    %827 = vadd.xlane.f32.xlu0 %v826
    %v828 = vpop.xlane.xlu0 %827
    %v829 = vsel %vm604, %v825, 0.0
    %830 = vadd.xlane.f32.xlu0 %v829
    %v831 = vpop.xlane.xlu0 %830
    %v832 = vrcp.pop %v828
    %v833 = vrcp.pop %v831
    %v834 = vmul.f32 %v823, %v832
    %v835 = vmul.f32 %v825, %v833
    %v836 = vpack.c.bf16 %v835, %v834
    %v837 = vpack.c.bf16 %v788, %v788
    %v839 = vsel %vm604, %v836, 0
    %v842 = vsel %vm632, %v837, 0
    %844 = vmatpush.bf16.msra.mxu0 0
    %845 = vmatpush.bf16.msra.mxu0 0
    %846 = vmatpush.bf16.msra.mxu0 0
    %847 = vmatpush.bf16.msra.mxu0 0
    %848 = vmatpush.bf16.msra.mxu0 0
    %849 = vmatpush.bf16.msra.mxu0 0
    %850 = vmatpush.bf16.msra.mxu0 0
    %851 = vmatpush.bf16.msra.mxu0 %v842
    %852 = vmatmul.bf16.gmra.mxu0 %v839
    %v853 = vpop.f32.mrf.mxu0
    %v854 = vadd.f32 0.0, %v853
    %v855 = vpop.f32.mrf.mxu0
    %v856 = vadd.f32 0.0, %v855
    %857 = vdwg.mxu0
    %v858 = vmax.f32 %v854, 0.0
    %v859 = vmax.f32 %v856, 0.0
    %v860 = vadd.f32 %v654, %v858
    %v861 = vadd.f32 %v655, %v859
    %v862 = vmax.f32 %v860, 0.0
    %v863 = vmax.f32 %v861, 0.0
    %864 = vst [vmem:[%s10] sm:$0xff] %v749
    %865 = vst [vmem:[%s11] sm:$0xff] %v862
    %866 = vst [vmem:[%s11 + $0x8] sm:$0xff] %v863
    // Predicated region
    $region58: #{sentence_function_interaction.1} parent=1 // pred_check
      _
    $region59: #{sentence_function_interaction.1} parent=1 // pred_check_branch
      %868 = sbr.rel (0) target = $region61
    $region60: #{sentence_function_interaction.1} parent=1 // pred_region
      _
    $region61: #{sentence_function_interaction.1} parent=1 // pred_fallthru
      _
    // Predicated region
    $region62: #{sentence_function_interaction.1} parent=1 // pred_check
      _
    $region63: #{sentence_function_interaction.1} parent=1 // pred_check_branch
      %870 = sbr.rel (0) target = $region65
    $region64: #{sentence_function_interaction.1} parent=1 // pred_region
      _
    $region65: #{sentence_function_interaction.1} parent=1 // pred_fallthru
      _
    // Predicated region
    $region66: #{sentence_function_interaction.1} parent=1 // pred_check
      _
    $region67: #{sentence_function_interaction.1} parent=1 // pred_check_branch
      %872 = sbr.rel (0) target = $region69
    $region68: #{sentence_function_interaction.1} parent=1 // pred_region
      _
    $region69: #{sentence_function_interaction.1} parent=1 // pred_fallthru
      _
    // Predicated region
    $region70: #{sentence_function_interaction.1} parent=1 // pred_check
      _
    $region71: #{sentence_function_interaction.1} parent=1 // pred_check_branch
      %874 = sbr.rel (0) target = $region73
    $region72: #{sentence_function_interaction.1} parent=1 // pred_region
      _
    $region73: #{sentence_function_interaction.1} parent=1 // pred_fallthru
      _
    %875 = vsyncpa [#allocation3], 1
    %876 = vsyncpa [#allocation5], 1
    %877 = vsyncpa [#allocation8], 1

</llo_original>
